<compile_context>
chip_gen: v7x
topology: tpu7x:2x2x1
jax: 0.10.0
libtpu: 0.0.40
codegen_flags: <defaults>
</compile_context>

<pallas_src>
import jax
import jax.numpy as jnp
from jax.experimental import pallas as pl
from jax.experimental.pallas import tpu as pltpu  # noqa: F401  (not needed for this tiny single-step kernel)

# ---------------- model dims (small, consistent with the module) ----------------
B, C, H, W = 2, 4, 16, 16
D = C * H * W          # 1024 flattened features
HID = 32               # hidden width of encoder/decoder MLPs
ZDIM = 8               # latent dim; encoder outputs 2*ZDIM channels, encode() keeps first half
AUG = HID + 8          # 40: column/row HID carries a constant 1.0 ("bias lane"), rest is padding


def ae_kernel(x_ref, w1p_ref, pk_ref, w4p_ref, out_ref):
    """Fused AE forward with all biases folded into augmented weights.

        h1 = relu(x @ w1p + b1p)     # (B, AUG) ; h1[:, HID] == 1, h1[:, HID+1:] == 0
        h2 = relu(h1 @ w23p)         # (B, AUG) ; b23 folded into row HID, passthrough keeps h2[:, HID] == 1
        y  = h2 @ w4p                # (B, D)   ; b4 folded into row HID
    """
    x = x_ref[...].astype(jnp.bfloat16)                    # in-kernel f32 -> bf16 cast (VPU filler)

    b1p = pk_ref[0:1, :]                                   # (1, AUG)  f32, static view
    w23p = pk_ref[8:8 + AUG, :]                            # (AUG, AUG) f32, static view

    h1 = jnp.dot(x, w1p_ref[...], preferred_element_type=jnp.float32) + b1p
    h1 = jnp.maximum(h1, 0.0)                              # (B, AUG) f32

    h2 = jnp.maximum(
        jnp.dot(h1, w23p, preferred_element_type=jnp.float32), 0.0)   # tiny f32 matmul

    recon = jnp.dot(h2.astype(jnp.bfloat16), w4p_ref[...],
                    preferred_element_type=jnp.float32)    # (B, D) f32

    out_ref[...] = recon


def _full_spec(shape):
    # Full-array block (no tiling needed at these sizes); everything fits in VMEM.
    return pl.BlockSpec(shape, lambda: tuple(0 for _ in shape))


def pack_params(params):
    """Host-side algebraic fold + bias augmentation + bf16 cast. Call ONCE at init.

    encode(): z = (h1 @ w2 + b2)[:, :ZDIM]; decoder layer 1: z @ w3 + b3 (linear -> linear,
    no activation/sampling between them), so they fold into W23 / b23 exactly.
    """
    w1, b1, w2, b2, w3, b3, w4, b4 = params
    W23 = w2[:, :ZDIM] @ w3                          # (HID, HID) f32
    b23 = b2[:, :ZDIM] @ w3 + b3                     # (1, HID)   f32

    # Layer 1: zero-pad w1 to width AUG; bias gets a 1.0 in the bias lane (col HID).
    w1p = jnp.zeros((D, AUG), jnp.float32).at[:, :HID].set(w1)
    b1p = (jnp.zeros((1, AUG), jnp.float32)
           .at[:, :HID].set(b1)
           .at[0, HID].set(1.0))                     # -> h1[:, HID] == 1 after relu

    # Layer 2 (folded): b23 in row HID, 1.0 passthrough at [HID, HID].
    w23p = (jnp.zeros((AUG, AUG), jnp.float32)
            .at[:HID, :HID].set(W23)
            .at[HID, :HID].set(b23[0])
            .at[HID, HID].set(1.0))

    # Layer 3: b4 folded into row HID.
    w4p = (jnp.zeros((AUG, D), jnp.float32)
           .at[:HID, :].set(w4)
           .at[HID, :].set(b4[0]))

    # Pack b1p + w23p into one small f32 buffer (sublane-aligned static slices in-kernel).
    pk = (jnp.zeros((8 + AUG, AUG), jnp.float32)
          .at[0:1, :].set(b1p)
          .at[8:8 + AUG, :].set(w23p))

    return w1p.astype(jnp.bfloat16), pk, w4p.astype(jnp.bfloat16)


@jax.jit
def ae_forward(x_nchw, w1p_bf, pk, w4p_bf):
    x_flat = x_nchw.reshape(B, D)                    # f32; cast to bf16 happens in-kernel

    flops = 2 * B * (D * AUG + AUG * AUG + AUG * D)
    bytes_accessed = (
        x_flat.size * 4
        + w1p_bf.size * 2 + pk.size * 4 + w4p_bf.size * 2
        + B * D * 4  # output
    )

    recon_flat = pl.pallas_call(
        ae_kernel,
        out_shape=jax.ShapeDtypeStruct((B, D), jnp.float32),
        grid=(),
        in_specs=[
            _full_spec((B, D)),
            _full_spec((D, AUG)),
            _full_spec((8 + AUG, AUG)),
            _full_spec((AUG, D)),
        ],
        out_specs=_full_spec((B, D)),
        cost_estimate=pl.CostEstimate(
            flops=flops, transcendentals=0, bytes_accessed=bytes_accessed),
    )(x_flat, w1p_bf, pk, w4p_bf)

    return recon_flat.reshape(B, C, H, W)


def init_params(key):
    """Deterministic init mimicking PyTorch Linear default (uniform +-1/sqrt(fan_in))."""
    def lin(k, fan_in, fan_out):
        k1, k2 = jax.random.split(k)
        bound = 1.0 / jnp.sqrt(fan_in)
        w = jax.random.uniform(k1, (fan_in, fan_out), jnp.float32, -bound, bound)
        b = jax.random.uniform(k2, (1, fan_out), jnp.float32, -bound, bound)
        return w, b

    k1, k2, k3, k4 = jax.random.split(key, 4)
    w1, b1 = lin(k1, D, HID)            # encoder layer 1
    w2, b2 = lin(k2, HID, 2 * ZDIM)     # encoder layer 2 (outputs 2*ZDIM channels)
    w3, b3 = lin(k3, ZDIM, HID)         # decoder layer 1
    w4, b4 = lin(k4, HID, D)            # decoder layer 2
    return (w1, b1, w2, b2, w3, b3, w4, b4)


def ae_forward_ref(x_nchw, params):
    """Pure-JAX f32 reference mirroring the PyTorch AE.forward semantics."""
    w1, b1, w2, b2, w3, b3, w4, b4 = params
    x = x_nchw.reshape(B, D)
    h1 = jnp.maximum(x @ w1 + b1, 0.0)
    z_full = h1 @ w2 + b2
    half = z_full.shape[1] // 2
    z = z_full[:, :half]
    h2 = jnp.maximum(z @ w3 + b3, 0.0)
    recon = h2 @ w4 + b4
    return recon.reshape(B, C, H, W)


def ae_forward_ref_packed(x_nchw, w1p_bf, pk, w4p_bf):
    """Pure-JAX reference doing the SAME augmented/folded/bf16 math as the kernel."""
    x = x_nchw.reshape(B, D).astype(jnp.bfloat16)
    b1p = pk[0:1, :]
    w23p = pk[8:8 + AUG, :]
    h1 = jnp.maximum(
        jnp.dot(x, w1p_bf, preferred_element_type=jnp.float32) + b1p, 0.0)
    h2 = jnp.maximum(
        jnp.dot(h1, w23p, preferred_element_type=jnp.float32), 0.0)
    recon = jnp.dot(h2.astype(jnp.bfloat16), w4p_bf,
                    preferred_element_type=jnp.float32)
    return recon.reshape(B, C, H, W)


if __name__ == "__main__":
    key = jax.random.PRNGKey(0)
    k_x, k_p = jax.random.split(key)
    x = jax.random.normal(k_x, (B, C, H, W), jnp.float32)
    params = init_params(k_p)

    # Fold/pack done ONCE at init (not in the per-forward path).
    w1p_bf, pk, w4p_bf = pack_params(params)
    w1p_bf, pk, w4p_bf = jax.device_put((w1p_bf, pk, w4p_bf))

    recon = ae_forward(x, w1p_bf, pk, w4p_bf)
    recon = jax.block_until_ready(recon)
    assert recon.shape == (B, C, H, W)

    # Tight check: pure-JAX path doing the identical augmented/bf16 math.
    ref_packed = ae_forward_ref_packed(x, w1p_bf, pk, w4p_bf)
    assert jnp.allclose(recon, ref_packed, atol=1e-2, rtol=1e-2), \
        "mismatch vs packed/bf16 reference"

    # Semantics check against the full-precision PyTorch-equivalent reference
    # (bf16 weights + host fold change rounding, so tolerance is looser).
    ref_f32 = ae_forward_ref(x, params)
    assert jnp.allclose(recon, ref_f32, atol=3e-2, rtol=3e-2), \
        "mismatch vs f32 AE.forward reference"

    print("KERNEL_OK")
</pallas_src>

<mosaic_0001>
module attributes {stable_mosaic.version = 11 : i64} {
  func.func @ae_kernel(%arg0: memref<2x1024xf32, #tpu.memory_space<vmem>>, %arg1: memref<1024x40xbf16, #tpu.memory_space<vmem>>, %arg2: memref<48x40xf32, #tpu.memory_space<vmem>>, %arg3: memref<40x1024xbf16, #tpu.memory_space<vmem>>, %arg4: memref<2x1024xf32, #tpu.memory_space<vmem>>) attributes {dimension_semantics = [], scalar_prefetch = 0 : i64, scratch_operands = 0 : i64, tpu.core_type = #tpu.core_type<tc>} {
    %c0 = arith.constant 0 : index
    %c0_0 = arith.constant 0 : index
    %0 = vector.load %arg0[%c0, %c0_0] : memref<2x1024xf32, #tpu.memory_space<vmem>>, vector<2x1024xf32>
    %1 = arith.truncf %0 : vector<2x1024xf32> to vector<2x1024xbf16>
    %c0_1 = arith.constant 0 : index
    %c0_2 = arith.constant 0 : index
    %2 = vector.load %arg2[%c0_1, %c0_2] : memref<48x40xf32, #tpu.memory_space<vmem>>, vector<1x40xf32>
    %c8 = arith.constant 8 : index
    %c0_3 = arith.constant 0 : index
    %3 = vector.load %arg2[%c8, %c0_3] : memref<48x40xf32, #tpu.memory_space<vmem>>, vector<40x40xf32>
    %c0_4 = arith.constant 0 : index
    %c0_5 = arith.constant 0 : index
    %4 = vector.load %arg1[%c0_4, %c0_5] : memref<1024x40xbf16, #tpu.memory_space<vmem>>, vector<1024x40xbf16>
    %cst = arith.constant dense<0.000000e+00> : vector<2x40xf32>
    %5 = tpu.matmul %1, %4, %cst {dimension_numbers = #tpu.dot_dimension_numbers<[1], [0], [0], [1], [0, 0, 1, 1], [], []>} : vector<2x1024xbf16>, vector<1024x40xbf16>, vector<2x40xf32> -> vector<2x40xf32>
    %6 = vector.broadcast %2 : vector<1x40xf32> to vector<2x40xf32>
    %7 = arith.addf %5, %6 : vector<2x40xf32>
    %cst_6 = arith.constant 0.000000e+00 : f32
    %8 = vector.broadcast %cst_6 : f32 to vector<2x40xf32>
    %9 = arith.maximumf %7, %8 : vector<2x40xf32>
    %cst_7 = arith.constant dense<0.000000e+00> : vector<2x40xf32>
    %10 = tpu.matmul %9, %3, %cst_7 {dimension_numbers = #tpu.dot_dimension_numbers<[1], [0], [0], [1], [0, 0, 1, 1], [], []>} : vector<2x40xf32>, vector<40x40xf32>, vector<2x40xf32> -> vector<2x40xf32>
    %cst_8 = arith.constant 0.000000e+00 : f32
    %11 = vector.broadcast %cst_8 : f32 to vector<2x40xf32>
    %12 = arith.maximumf %10, %11 : vector<2x40xf32>
    %13 = arith.truncf %12 : vector<2x40xf32> to vector<2x40xbf16>
    %c0_9 = arith.constant 0 : index
    %c0_10 = arith.constant 0 : index
    %14 = vector.load %arg3[%c0_9, %c0_10] : memref<40x1024xbf16, #tpu.memory_space<vmem>>, vector<40x1024xbf16>
    %cst_11 = arith.constant dense<0.000000e+00> : vector<2x1024xf32>
    %15 = tpu.matmul %13, %14, %cst_11 {dimension_numbers = #tpu.dot_dimension_numbers<[1], [0], [0], [1], [0, 0, 1, 1], [], []>} : vector<2x40xbf16>, vector<40x1024xbf16>, vector<2x1024xf32> -> vector<2x1024xf32>
    %c0_12 = arith.constant 0 : index
    %c0_13 = arith.constant 0 : index
    %16 = vector.load %arg4[%c0_12, %c0_13] : memref<2x1024xf32, #tpu.memory_space<vmem>>, vector<2x1024xf32>
    tpu.vector_store %arg4[%c0_12, %c0_13], %15 {strides = array<i32>} : memref<2x1024xf32, #tpu.memory_space<vmem>>, vector<2x1024xf32>,
    return
  }
}

</mosaic_0001>

<llo_original>
// kernel: ae_forward.1
$region0: #{ae_forward.1}
  #allocation0 [shape = 'u32[]', space=smem, size = 0x4, offset = 0x4, fixed_abs, tag = 'smem constant byte address 0x4 - core index']
  #allocation1 [shape = 'u32[144,128]{1,0:T(1,128)}', space=vmem, size = 0x12000, scoped, tag = 'internal scratch']
  %s0 = inlined_call_operand.vmem [shape: f32[2,1024], index: 0, kind: input, shape index: {}]
  %s1 = inlined_call_operand.vmem [shape: bf16[1024,40], index: 1, kind: input, shape index: {}]
  %s2 = inlined_call_operand.vmem [shape: f32[48,40], index: 2, kind: input, shape index: {}]
  %s3 = inlined_call_operand.vmem [shape: bf16[40,1024], index: 3, kind: input, shape index: {}]
  %s4 = inlined_call_operand.vmem [shape: f32[2,1024], index: 4, kind: output, shape index: {}]
  %s5 = sld [smem:[#allocation0]]
  $region26: #{ae_forward.1} parent=0
    _
  %s7 = ssub.s32 1, %s5
  %s8 = scalar_select 0, %s7, %s5
  // Predicated region
  $region2: #{ae_forward.1} parent=0 // pred_check
    _
  $region3: #{ae_forward.1} parent=0 // pred_check_branch
    %10 = sbr.rel (0) target = $region5
  $region4: #{ae_forward.1} parent=0 // pred_region
    _
  $region5: #{ae_forward.1} parent=0 // pred_fallthru
    _
  // Predicated region
  $region6: #{ae_forward.1} parent=0 // pred_check
    _
  $region7: #{ae_forward.1} parent=0 // pred_check_branch
    %12 = sbr.rel (0) target = $region9
  $region8: #{ae_forward.1} parent=0 // pred_region
    _
  $region9: #{ae_forward.1} parent=0 // pred_fallthru
    _
  // Predicated region
  $region10: #{ae_forward.1} parent=0 // pred_check
    _
  $region11: #{ae_forward.1} parent=0 // pred_check_branch
    %14 = sbr.rel (0) target = $region13
  $region12: #{ae_forward.1} parent=0 // pred_region
    _
  $region13: #{ae_forward.1} parent=0 // pred_fallthru
    _
  // Predicated region
  $region14: #{ae_forward.1} parent=0 // pred_check
    _
  $region15: #{ae_forward.1} parent=0 // pred_check_branch
    %16 = sbr.rel (0) target = $region17
  $region16: #{ae_forward.1} parent=0 // pred_region
    _
  $region17: #{ae_forward.1} parent=0 // pred_fallthru
    _
  %v18 = vld [vmem:[%s0] sm:$0xff]
  %v19 = vld [vmem:[%s0 + $0x8] sm:$0xff]
  %v22 = vcombine.high %v18, %v18
  %v24 = vunpack.c.l.s4 1983009808
  %v25 = vunpack.c.0.s8 %v24
  %v26 = vlaneseq
  %v27 = vshrl.u32 %v26, 7
  %v28 = vsub.s32 %v25, %v27
  %v29 = vrot.slane %v18, %v28
  %v31 = vunpack.c.l.s4 1983009808
  %v32 = vunpack.c.0.s8 %v31
  %v33 = vlaneseq
  %v34 = vshrl.u32 %v33, 7
  %v35 = vsub.s32 %v32, %v34
  %v36 = vrot.slane %v22, %v35
  %v37 = vcombine.high %v29, %v29
  %v38 = vcombine.high %v36, %v36
  %v39 = vcombine.high %v19, %v19
  %v41 = vunpack.c.l.s4 1983009808
  %v42 = vunpack.c.0.s8 %v41
  %v43 = vlaneseq
  %v44 = vshrl.u32 %v43, 7
  %v45 = vsub.s32 %v42, %v44
  %v46 = vrot.slane %v19, %v45
  %v48 = vunpack.c.l.s4 1983009808
  %v49 = vunpack.c.0.s8 %v48
  %v50 = vlaneseq
  %v51 = vshrl.u32 %v50, 7
  %v52 = vsub.s32 %v49, %v51
  %v53 = vrot.slane %v39, %v52
  %v54 = vcombine.high %v46, %v46
  %v55 = vcombine.high %v53, %v53
  %v64 = vpack.c.bf16 %v29, %v29
  %v65 = vpack.c.bf16 %v37, %v37
  %v66 = vpack.c.bf16 %v36, %v36
  %v67 = vpack.c.bf16 %v38, %v38
  %v68 = vpack.c.bf16 %v46, %v46
  %v69 = vpack.c.bf16 %v54, %v54
  %v70 = vpack.c.bf16 %v53, %v53
  %v71 = vpack.c.bf16 %v55, %v55
  %v72 = vld [vmem:[%s2] sm:$0x1]
  %v73 = vld [vmem:[%s2 + $0x8] sm:$0xff]
  %v74 = vld [vmem:[%s2 + $0x10] sm:$0xff]
  %v75 = vld [vmem:[%s2 + $0x18] sm:$0xff]
  %v76 = vld [vmem:[%s2 + $0x20] sm:$0xff]
  %v77 = vld [vmem:[%s2 + $0x28] sm:$0xff]
  %v78 = vld [vmem:[%s1] sm:$0xf]
  %v79 = vld [vmem:[%s1 + $0x4] sm:$0xf]
  %v80 = vld [vmem:[%s1 + $0x8] sm:$0xf]
  %v81 = vld [vmem:[%s1 + $0xc] sm:$0xf]
  %v82 = vld [vmem:[%s1 + $0x10] sm:$0xf]
  %v83 = vld [vmem:[%s1 + $0x14] sm:$0xf]
  %v84 = vld [vmem:[%s1 + $0x18] sm:$0xf]
  %v85 = vld [vmem:[%s1 + $0x1c] sm:$0xf]
  %v86 = vld [vmem:[%s1 + $0x20] sm:$0xf]
  %v87 = vld [vmem:[%s1 + $0x24] sm:$0xf]
  %v88 = vld [vmem:[%s1 + $0x28] sm:$0xf]
  %v89 = vld [vmem:[%s1 + $0x2c] sm:$0xf]
  %v90 = vld [vmem:[%s1 + $0x30] sm:$0xf]
  %v91 = vld [vmem:[%s1 + $0x34] sm:$0xf]
  %v92 = vld [vmem:[%s1 + $0x38] sm:$0xf]
  %v93 = vld [vmem:[%s1 + $0x3c] sm:$0xf]
  %v94 = vld [vmem:[%s1 + $0x40] sm:$0xf]
  %v95 = vld [vmem:[%s1 + $0x44] sm:$0xf]
  %v96 = vld [vmem:[%s1 + $0x48] sm:$0xf]
  %v97 = vld [vmem:[%s1 + $0x4c] sm:$0xf]
  %v98 = vld [vmem:[%s1 + $0x50] sm:$0xf]
  %v99 = vld [vmem:[%s1 + $0x54] sm:$0xf]
  %v100 = vld [vmem:[%s1 + $0x58] sm:$0xf]
  %v101 = vld [vmem:[%s1 + $0x5c] sm:$0xf]
  %v102 = vld [vmem:[%s1 + $0x60] sm:$0xf]
  %v103 = vld [vmem:[%s1 + $0x64] sm:$0xf]
  %v104 = vld [vmem:[%s1 + $0x68] sm:$0xf]
  %v105 = vld [vmem:[%s1 + $0x6c] sm:$0xf]
  %v106 = vld [vmem:[%s1 + $0x70] sm:$0xf]
  %v107 = vld [vmem:[%s1 + $0x74] sm:$0xf]
  %v108 = vld [vmem:[%s1 + $0x78] sm:$0xf]
  %v109 = vld [vmem:[%s1 + $0x7c] sm:$0xf]
  %v110 = vld [vmem:[%s1 + $0x80] sm:$0xf]
  %v111 = vld [vmem:[%s1 + $0x84] sm:$0xf]
  %v112 = vld [vmem:[%s1 + $0x88] sm:$0xf]
  %v113 = vld [vmem:[%s1 + $0x8c] sm:$0xf]
  %v114 = vld [vmem:[%s1 + $0x90] sm:$0xf]
  %v115 = vld [vmem:[%s1 + $0x94] sm:$0xf]
  %v116 = vld [vmem:[%s1 + $0x98] sm:$0xf]
  %v117 = vld [vmem:[%s1 + $0x9c] sm:$0xf]
  %v118 = vld [vmem:[%s1 + $0xa0] sm:$0xf]
  %v119 = vld [vmem:[%s1 + $0xa4] sm:$0xf]
  %v120 = vld [vmem:[%s1 + $0xa8] sm:$0xf]
  %v121 = vld [vmem:[%s1 + $0xac] sm:$0xf]
  %v122 = vld [vmem:[%s1 + $0xb0] sm:$0xf]
  %v123 = vld [vmem:[%s1 + $0xb4] sm:$0xf]
  %v124 = vld [vmem:[%s1 + $0xb8] sm:$0xf]
  %v125 = vld [vmem:[%s1 + $0xbc] sm:$0xf]
  %v126 = vld [vmem:[%s1 + $0xc0] sm:$0xf]
  %v127 = vld [vmem:[%s1 + $0xc4] sm:$0xf]
  %v128 = vld [vmem:[%s1 + $0xc8] sm:$0xf]
  %v129 = vld [vmem:[%s1 + $0xcc] sm:$0xf]
  %v130 = vld [vmem:[%s1 + $0xd0] sm:$0xf]
  %v131 = vld [vmem:[%s1 + $0xd4] sm:$0xf]
  %v132 = vld [vmem:[%s1 + $0xd8] sm:$0xf]
  %v133 = vld [vmem:[%s1 + $0xdc] sm:$0xf]
  %v134 = vld [vmem:[%s1 + $0xe0] sm:$0xf]
  %v135 = vld [vmem:[%s1 + $0xe4] sm:$0xf]
  %v136 = vld [vmem:[%s1 + $0xe8] sm:$0xf]
  %v137 = vld [vmem:[%s1 + $0xec] sm:$0xf]
  %v138 = vld [vmem:[%s1 + $0xf0] sm:$0xf]
  %v139 = vld [vmem:[%s1 + $0xf4] sm:$0xf]
  %v140 = vld [vmem:[%s1 + $0xf8] sm:$0xf]
  %v141 = vld [vmem:[%s1 + $0xfc] sm:$0xf]
  %v142 = vld [vmem:[%s1 + $0x100] sm:$0xf]
  %v143 = vld [vmem:[%s1 + $0x104] sm:$0xf]
  %v144 = vld [vmem:[%s1 + $0x108] sm:$0xf]
  %v145 = vld [vmem:[%s1 + $0x10c] sm:$0xf]
  %v146 = vld [vmem:[%s1 + $0x110] sm:$0xf]
  %v147 = vld [vmem:[%s1 + $0x114] sm:$0xf]
  %v148 = vld [vmem:[%s1 + $0x118] sm:$0xf]
  %v149 = vld [vmem:[%s1 + $0x11c] sm:$0xf]
  %v150 = vld [vmem:[%s1 + $0x120] sm:$0xf]
  %v151 = vld [vmem:[%s1 + $0x124] sm:$0xf]
  %v152 = vld [vmem:[%s1 + $0x128] sm:$0xf]
  %v153 = vld [vmem:[%s1 + $0x12c] sm:$0xf]
  %v154 = vld [vmem:[%s1 + $0x130] sm:$0xf]
  %v155 = vld [vmem:[%s1 + $0x134] sm:$0xf]
  %v156 = vld [vmem:[%s1 + $0x138] sm:$0xf]
  %v157 = vld [vmem:[%s1 + $0x13c] sm:$0xf]
  %v158 = vld [vmem:[%s1 + $0x140] sm:$0xf]
  %v159 = vld [vmem:[%s1 + $0x144] sm:$0xf]
  %v160 = vld [vmem:[%s1 + $0x148] sm:$0xf]
  %v161 = vld [vmem:[%s1 + $0x14c] sm:$0xf]
  %v162 = vld [vmem:[%s1 + $0x150] sm:$0xf]
  %v163 = vld [vmem:[%s1 + $0x154] sm:$0xf]
  %v164 = vld [vmem:[%s1 + $0x158] sm:$0xf]
  %v165 = vld [vmem:[%s1 + $0x15c] sm:$0xf]
  %v166 = vld [vmem:[%s1 + $0x160] sm:$0xf]
  %v167 = vld [vmem:[%s1 + $0x164] sm:$0xf]
  %v168 = vld [vmem:[%s1 + $0x168] sm:$0xf]
  %v169 = vld [vmem:[%s1 + $0x16c] sm:$0xf]
  %v170 = vld [vmem:[%s1 + $0x170] sm:$0xf]
  %v171 = vld [vmem:[%s1 + $0x174] sm:$0xf]
  %v172 = vld [vmem:[%s1 + $0x178] sm:$0xf]
  %v173 = vld [vmem:[%s1 + $0x17c] sm:$0xf]
  %v174 = vld [vmem:[%s1 + $0x180] sm:$0xf]
  %v175 = vld [vmem:[%s1 + $0x184] sm:$0xf]
  %v176 = vld [vmem:[%s1 + $0x188] sm:$0xf]
  %v177 = vld [vmem:[%s1 + $0x18c] sm:$0xf]
  %v178 = vld [vmem:[%s1 + $0x190] sm:$0xf]
  %v179 = vld [vmem:[%s1 + $0x194] sm:$0xf]
  %v180 = vld [vmem:[%s1 + $0x198] sm:$0xf]
  %v181 = vld [vmem:[%s1 + $0x19c] sm:$0xf]
  %v182 = vld [vmem:[%s1 + $0x1a0] sm:$0xf]
  %v183 = vld [vmem:[%s1 + $0x1a4] sm:$0xf]
  %v184 = vld [vmem:[%s1 + $0x1a8] sm:$0xf]
  %v185 = vld [vmem:[%s1 + $0x1ac] sm:$0xf]
  %v186 = vld [vmem:[%s1 + $0x1b0] sm:$0xf]
  %v187 = vld [vmem:[%s1 + $0x1b4] sm:$0xf]
  %v188 = vld [vmem:[%s1 + $0x1b8] sm:$0xf]
  %v189 = vld [vmem:[%s1 + $0x1bc] sm:$0xf]
  %v190 = vld [vmem:[%s1 + $0x1c0] sm:$0xf]
  %v191 = vld [vmem:[%s1 + $0x1c4] sm:$0xf]
  %v192 = vld [vmem:[%s1 + $0x1c8] sm:$0xf]
  %v193 = vld [vmem:[%s1 + $0x1cc] sm:$0xf]
  %v194 = vld [vmem:[%s1 + $0x1d0] sm:$0xf]
  %v195 = vld [vmem:[%s1 + $0x1d4] sm:$0xf]
  %v196 = vld [vmem:[%s1 + $0x1d8] sm:$0xf]
  %v197 = vld [vmem:[%s1 + $0x1dc] sm:$0xf]
  %v198 = vld [vmem:[%s1 + $0x1e0] sm:$0xf]
  %v199 = vld [vmem:[%s1 + $0x1e4] sm:$0xf]
  %v200 = vld [vmem:[%s1 + $0x1e8] sm:$0xf]
  %v201 = vld [vmem:[%s1 + $0x1ec] sm:$0xf]
  %v202 = vld [vmem:[%s1 + $0x1f0] sm:$0xf]
  %v203 = vld [vmem:[%s1 + $0x1f4] sm:$0xf]
  %v204 = vld [vmem:[%s1 + $0x1f8] sm:$0xf]
  %v205 = vld [vmem:[%s1 + $0x1fc] sm:$0xf]
  %v206 = vlaneseq
  %v207 = vshrl.u32 %v206, 7
  %v208 = vsub.s32 0, %v207
  %v209 = vrot.slane %v72, %v208
  %v338 = vunpack.c.l.b16 %v78
  %v339 = vunpack.c.l.b16 %v79
  %v340 = vunpack.c.l.b16 %v80
  %v341 = vunpack.c.l.b16 %v81
  %v342 = vunpack.c.l.b16 %v82
  %v343 = vunpack.c.l.b16 %v83
  %v344 = vunpack.c.l.b16 %v84
  %v345 = vunpack.c.l.b16 %v85
  %v346 = vunpack.c.l.b16 %v86
  %v347 = vunpack.c.l.b16 %v87
  %v348 = vunpack.c.l.b16 %v88
  %v349 = vunpack.c.l.b16 %v89
  %v350 = vunpack.c.l.b16 %v90
  %v351 = vunpack.c.l.b16 %v91
  %v352 = vunpack.c.l.b16 %v92
  %v353 = vunpack.c.l.b16 %v93
  %v354 = vunpack.c.l.b16 %v94
  %v355 = vunpack.c.l.b16 %v95
  %v356 = vunpack.c.l.b16 %v96
  %v357 = vunpack.c.l.b16 %v97
  %v358 = vunpack.c.l.b16 %v98
  %v359 = vunpack.c.l.b16 %v99
  %v360 = vunpack.c.l.b16 %v100
  %v361 = vunpack.c.l.b16 %v101
  %v362 = vunpack.c.l.b16 %v102
  %v363 = vunpack.c.l.b16 %v103
  %v364 = vunpack.c.l.b16 %v104
  %v365 = vunpack.c.l.b16 %v105
  %v366 = vunpack.c.l.b16 %v106
  %v367 = vunpack.c.l.b16 %v107
  %v368 = vunpack.c.l.b16 %v108
  %v369 = vunpack.c.l.b16 %v109
  %v370 = vunpack.c.l.b16 %v110
  %v371 = vunpack.c.l.b16 %v111
  %v372 = vunpack.c.l.b16 %v112
  %v373 = vunpack.c.l.b16 %v113
  %v374 = vunpack.c.l.b16 %v114
  %v375 = vunpack.c.l.b16 %v115
  %v376 = vunpack.c.l.b16 %v116
  %v377 = vunpack.c.l.b16 %v117
  %v378 = vunpack.c.l.b16 %v118
  %v379 = vunpack.c.l.b16 %v119
  %v380 = vunpack.c.l.b16 %v120
  %v381 = vunpack.c.l.b16 %v121
  %v382 = vunpack.c.l.b16 %v122
  %v383 = vunpack.c.l.b16 %v123
  %v384 = vunpack.c.l.b16 %v124
  %v385 = vunpack.c.l.b16 %v125
  %v386 = vunpack.c.l.b16 %v126
  %v387 = vunpack.c.l.b16 %v127
  %v388 = vunpack.c.l.b16 %v128
  %v389 = vunpack.c.l.b16 %v129
  %v390 = vunpack.c.l.b16 %v130
  %v391 = vunpack.c.l.b16 %v131
  %v392 = vunpack.c.l.b16 %v132
  %v393 = vunpack.c.l.b16 %v133
  %v394 = vunpack.c.l.b16 %v134
  %v395 = vunpack.c.l.b16 %v135
  %v396 = vunpack.c.l.b16 %v136
  %v397 = vunpack.c.l.b16 %v137
  %v398 = vunpack.c.l.b16 %v138
  %v399 = vunpack.c.l.b16 %v139
  %v400 = vunpack.c.l.b16 %v140
  %v401 = vunpack.c.l.b16 %v141
  %v402 = vunpack.c.l.b16 %v142
  %v403 = vunpack.c.l.b16 %v143
  %v404 = vunpack.c.l.b16 %v144
  %v405 = vunpack.c.l.b16 %v145
  %v406 = vunpack.c.l.b16 %v146
  %v407 = vunpack.c.l.b16 %v147
  %v408 = vunpack.c.l.b16 %v148
  %v409 = vunpack.c.l.b16 %v149
  %v410 = vunpack.c.l.b16 %v150
  %v411 = vunpack.c.l.b16 %v151
  %v412 = vunpack.c.l.b16 %v152
  %v413 = vunpack.c.l.b16 %v153
  %v414 = vunpack.c.l.b16 %v154
  %v415 = vunpack.c.l.b16 %v155
  %v416 = vunpack.c.l.b16 %v156
  %v417 = vunpack.c.l.b16 %v157
  %v418 = vunpack.c.l.b16 %v158
  %v419 = vunpack.c.l.b16 %v159
  %v420 = vunpack.c.l.b16 %v160
  %v421 = vunpack.c.l.b16 %v161
  %v422 = vunpack.c.l.b16 %v162
  %v423 = vunpack.c.l.b16 %v163
  %v424 = vunpack.c.l.b16 %v164
  %v425 = vunpack.c.l.b16 %v165
  %v426 = vunpack.c.l.b16 %v166
  %v427 = vunpack.c.l.b16 %v167
  %v428 = vunpack.c.l.b16 %v168
  %v429 = vunpack.c.l.b16 %v169
  %v430 = vunpack.c.l.b16 %v170
  %v431 = vunpack.c.l.b16 %v171
  %v432 = vunpack.c.l.b16 %v172
  %v433 = vunpack.c.l.b16 %v173
  %v434 = vunpack.c.l.b16 %v174
  %v435 = vunpack.c.l.b16 %v175
  %v436 = vunpack.c.l.b16 %v176
  %v437 = vunpack.c.l.b16 %v177
  %v438 = vunpack.c.l.b16 %v178
  %v439 = vunpack.c.l.b16 %v179
  %v440 = vunpack.c.l.b16 %v180
  %v441 = vunpack.c.l.b16 %v181
  %v442 = vunpack.c.l.b16 %v182
  %v443 = vunpack.c.l.b16 %v183
  %v444 = vunpack.c.l.b16 %v184
  %v445 = vunpack.c.l.b16 %v185
  %v446 = vunpack.c.l.b16 %v186
  %v447 = vunpack.c.l.b16 %v187
  %v448 = vunpack.c.l.b16 %v188
  %v449 = vunpack.c.l.b16 %v189
  %v450 = vunpack.c.l.b16 %v190
  %v451 = vunpack.c.l.b16 %v191
  %v452 = vunpack.c.l.b16 %v192
  %v453 = vunpack.c.l.b16 %v193
  %v454 = vunpack.c.l.b16 %v194
  %v455 = vunpack.c.l.b16 %v195
  %v456 = vunpack.c.l.b16 %v196
  %v457 = vunpack.c.l.b16 %v197
  %v458 = vunpack.c.l.b16 %v198
  %v459 = vunpack.c.l.b16 %v199
  %v460 = vunpack.c.l.b16 %v200
  %v461 = vunpack.c.l.b16 %v201
  %v462 = vunpack.c.l.b16 %v202
  %v463 = vunpack.c.l.b16 %v203
  %v464 = vunpack.c.l.b16 %v204
  %v465 = vunpack.c.l.b16 %v205
  %v466 = vpack.c.b16 %v339, %v338
  %v467 = vpack.c.b16 %v341, %v340
  %v468 = vpack.c.b16 %v343, %v342
  %v469 = vpack.c.b16 %v345, %v344
  %v470 = vpack.c.b16 %v347, %v346
  %v471 = vpack.c.b16 %v349, %v348
  %v472 = vpack.c.b16 %v351, %v350
  %v473 = vpack.c.b16 %v353, %v352
  %v474 = vpack.c.b16 %v355, %v354
  %v475 = vpack.c.b16 %v357, %v356
  %v476 = vpack.c.b16 %v359, %v358
  %v477 = vpack.c.b16 %v361, %v360
  %v478 = vpack.c.b16 %v363, %v362
  %v479 = vpack.c.b16 %v365, %v364
  %v480 = vpack.c.b16 %v367, %v366
  %v481 = vpack.c.b16 %v369, %v368
  %v482 = vpack.c.b16 %v371, %v370
  %v483 = vpack.c.b16 %v373, %v372
  %v484 = vpack.c.b16 %v375, %v374
  %v485 = vpack.c.b16 %v377, %v376
  %v486 = vpack.c.b16 %v379, %v378
  %v487 = vpack.c.b16 %v381, %v380
  %v488 = vpack.c.b16 %v383, %v382
  %v489 = vpack.c.b16 %v385, %v384
  %v490 = vpack.c.b16 %v387, %v386
  %v491 = vpack.c.b16 %v389, %v388
  %v492 = vpack.c.b16 %v391, %v390
  %v493 = vpack.c.b16 %v393, %v392
  %v494 = vpack.c.b16 %v395, %v394
  %v495 = vpack.c.b16 %v397, %v396
  %v496 = vpack.c.b16 %v399, %v398
  %v497 = vpack.c.b16 %v401, %v400
  %v498 = vpack.c.b16 %v403, %v402
  %v499 = vpack.c.b16 %v405, %v404
  %v500 = vpack.c.b16 %v407, %v406
  %v501 = vpack.c.b16 %v409, %v408
  %v502 = vpack.c.b16 %v411, %v410
  %v503 = vpack.c.b16 %v413, %v412
  %v504 = vpack.c.b16 %v415, %v414
  %v505 = vpack.c.b16 %v417, %v416
  %v506 = vpack.c.b16 %v419, %v418
  %v507 = vpack.c.b16 %v421, %v420
  %v508 = vpack.c.b16 %v423, %v422
  %v509 = vpack.c.b16 %v425, %v424
  %v510 = vpack.c.b16 %v427, %v426
  %v511 = vpack.c.b16 %v429, %v428
  %v512 = vpack.c.b16 %v431, %v430
  %v513 = vpack.c.b16 %v433, %v432
  %v514 = vpack.c.b16 %v435, %v434
  %v515 = vpack.c.b16 %v437, %v436
  %v516 = vpack.c.b16 %v439, %v438
  %v517 = vpack.c.b16 %v441, %v440
  %v518 = vpack.c.b16 %v443, %v442
  %v519 = vpack.c.b16 %v445, %v444
  %v520 = vpack.c.b16 %v447, %v446
  %v521 = vpack.c.b16 %v449, %v448
  %v522 = vpack.c.b16 %v451, %v450
  %v523 = vpack.c.b16 %v453, %v452
  %v524 = vpack.c.b16 %v455, %v454
  %v525 = vpack.c.b16 %v457, %v456
  %v526 = vpack.c.b16 %v459, %v458
  %v527 = vpack.c.b16 %v461, %v460
  %v528 = vpack.c.b16 %v463, %v462
  %v529 = vpack.c.b16 %v465, %v464
  %594 = vmatprep.subr.bf16.mxu0 0
  %595 = vmatpush1.bf16.msra.mxu0 %v466
  %596 = vmatprep.subr.bf16.mxu0 0
  %597 = vmatpush1.bf16.msra.mxu0 %v467
  %598 = vmatprep.subr.bf16.mxu0 0
  %599 = vmatpush1.bf16.msra.mxu0 %v468
  %600 = vmatprep.subr.bf16.mxu0 0
  %601 = vmatpush1.bf16.msra.mxu0 %v469
  %602 = vmatprep.subr.bf16.mxu0 0
  %603 = vmatpush1.bf16.msra.mxu0 %v470
  %604 = vmatprep.subr.bf16.mxu0 0
  %605 = vmatpush1.bf16.msra.mxu0 %v471
  %606 = vmatprep.subr.bf16.mxu0 0
  %607 = vmatpush1.bf16.msra.mxu0 %v472
  %608 = vmatprep.subr.bf16.mxu0 0
  %609 = vmatpush1.bf16.msra.mxu0 %v473
  %610 = vmatprep.subr.bf16.mxu0 0
  %611 = vmatpush1.bf16.msra.mxu0 %v474
  %612 = vmatprep.subr.bf16.mxu0 0
  %613 = vmatpush1.bf16.msra.mxu0 %v475
  %614 = vmatprep.subr.bf16.mxu0 0
  %615 = vmatpush1.bf16.msra.mxu0 %v476
  %616 = vmatprep.subr.bf16.mxu0 0
  %617 = vmatpush1.bf16.msra.mxu0 %v477
  %618 = vmatprep.subr.bf16.mxu0 0
  %619 = vmatpush1.bf16.msra.mxu0 %v478
  %620 = vmatprep.subr.bf16.mxu0 0
  %621 = vmatpush1.bf16.msra.mxu0 %v479
  %622 = vmatprep.subr.bf16.mxu0 0
  %623 = vmatpush1.bf16.msra.mxu0 %v480
  %624 = vmatprep.subr.bf16.mxu0 0
  %625 = vmatpush1.bf16.msra.mxu0 %v481
  %626 = vmatprep.mubr.bf16.mxu0 %v65
  %627 = vmatmul.mubr.bf16.gmra.mrb[0].mxu0 %v64
  %v628 = vpop.f32.mrb[0].mxu0
  %v629 = vadd.f32 %v209, %v628
  %v630 = vpop.f32.mrb[0].mxu0
  %v631 = vpop.f32.mrb[0].mxu0
  %v632 = vpop.f32.mrb[0].mxu0
  %633 = vdwg.mxu0
  %634 = vmatprep.subr.bf16.mxu0 0
  %635 = vmatpush1.bf16.msra.mxu0 %v482
  %636 = vmatprep.subr.bf16.mxu0 0
  %637 = vmatpush1.bf16.msra.mxu0 %v483
  %638 = vmatprep.subr.bf16.mxu0 0
  %639 = vmatpush1.bf16.msra.mxu0 %v484
  %640 = vmatprep.subr.bf16.mxu0 0
  %641 = vmatpush1.bf16.msra.mxu0 %v485
  %642 = vmatprep.subr.bf16.mxu0 0
  %643 = vmatpush1.bf16.msra.mxu0 %v486
  %644 = vmatprep.subr.bf16.mxu0 0
  %645 = vmatpush1.bf16.msra.mxu0 %v487
  %646 = vmatprep.subr.bf16.mxu0 0
  %647 = vmatpush1.bf16.msra.mxu0 %v488
  %648 = vmatprep.subr.bf16.mxu0 0
  %649 = vmatpush1.bf16.msra.mxu0 %v489
  %650 = vmatprep.subr.bf16.mxu0 0
  %651 = vmatpush1.bf16.msra.mxu0 %v490
  %652 = vmatprep.subr.bf16.mxu0 0
  %653 = vmatpush1.bf16.msra.mxu0 %v491
  %654 = vmatprep.subr.bf16.mxu0 0
  %655 = vmatpush1.bf16.msra.mxu0 %v492
  %656 = vmatprep.subr.bf16.mxu0 0
  %657 = vmatpush1.bf16.msra.mxu0 %v493
  %658 = vmatprep.subr.bf16.mxu0 0
  %659 = vmatpush1.bf16.msra.mxu0 %v494
  %660 = vmatprep.subr.bf16.mxu0 0
  %661 = vmatpush1.bf16.msra.mxu0 %v495
  %662 = vmatprep.subr.bf16.mxu0 0
  %663 = vmatpush1.bf16.msra.mxu0 %v496
  %664 = vmatprep.subr.bf16.mxu0 0
  %665 = vmatpush1.bf16.msra.mxu0 %v497
  %666 = vmatprep.mubr.bf16.mxu0 %v67
  %667 = vmatmul.mubr.bf16.gmra.mrb[0].mxu0 %v66
  %v668 = vpop.f32.mrb[0].mxu0
  %v669 = vadd.f32 %v629, %v668
  %v670 = vpop.f32.mrb[0].mxu0
  %v671 = vpop.f32.mrb[0].mxu0
  %v672 = vpop.f32.mrb[0].mxu0
  %673 = vdwg.mxu0
  %674 = vmatprep.subr.bf16.mxu0 0
  %675 = vmatpush1.bf16.msra.mxu0 %v498
  %676 = vmatprep.subr.bf16.mxu0 0
  %677 = vmatpush1.bf16.msra.mxu0 %v499
  %678 = vmatprep.subr.bf16.mxu0 0
  %679 = vmatpush1.bf16.msra.mxu0 %v500
  %680 = vmatprep.subr.bf16.mxu0 0
  %681 = vmatpush1.bf16.msra.mxu0 %v501
  %682 = vmatprep.subr.bf16.mxu0 0
  %683 = vmatpush1.bf16.msra.mxu0 %v502
  %684 = vmatprep.subr.bf16.mxu0 0
  %685 = vmatpush1.bf16.msra.mxu0 %v503
  %686 = vmatprep.subr.bf16.mxu0 0
  %687 = vmatpush1.bf16.msra.mxu0 %v504
  %688 = vmatprep.subr.bf16.mxu0 0
  %689 = vmatpush1.bf16.msra.mxu0 %v505
  %690 = vmatprep.subr.bf16.mxu0 0
  %691 = vmatpush1.bf16.msra.mxu0 %v506
  %692 = vmatprep.subr.bf16.mxu0 0
  %693 = vmatpush1.bf16.msra.mxu0 %v507
  %694 = vmatprep.subr.bf16.mxu0 0
  %695 = vmatpush1.bf16.msra.mxu0 %v508
  %696 = vmatprep.subr.bf16.mxu0 0
  %697 = vmatpush1.bf16.msra.mxu0 %v509
  %698 = vmatprep.subr.bf16.mxu0 0
  %699 = vmatpush1.bf16.msra.mxu0 %v510
  %700 = vmatprep.subr.bf16.mxu0 0
  %701 = vmatpush1.bf16.msra.mxu0 %v511
  %702 = vmatprep.subr.bf16.mxu0 0
  %703 = vmatpush1.bf16.msra.mxu0 %v512
  %704 = vmatprep.subr.bf16.mxu0 0
  %705 = vmatpush1.bf16.msra.mxu0 %v513
  %706 = vmatprep.mubr.bf16.mxu0 %v69
  %707 = vmatmul.mubr.bf16.gmra.mrb[0].mxu0 %v68
  %v708 = vpop.f32.mrb[0].mxu0
  %v709 = vadd.f32 %v669, %v708
  %v710 = vpop.f32.mrb[0].mxu0
  %v711 = vpop.f32.mrb[0].mxu0
  %v712 = vpop.f32.mrb[0].mxu0
  %713 = vdwg.mxu0
  %714 = vmatprep.subr.bf16.mxu0 0
  %715 = vmatpush1.bf16.msra.mxu0 %v514
  %716 = vmatprep.subr.bf16.mxu0 0
  %717 = vmatpush1.bf16.msra.mxu0 %v515
  %718 = vmatprep.subr.bf16.mxu0 0
  %719 = vmatpush1.bf16.msra.mxu0 %v516
  %720 = vmatprep.subr.bf16.mxu0 0
  %721 = vmatpush1.bf16.msra.mxu0 %v517
  %722 = vmatprep.subr.bf16.mxu0 0
  %723 = vmatpush1.bf16.msra.mxu0 %v518
  %724 = vmatprep.subr.bf16.mxu0 0
  %725 = vmatpush1.bf16.msra.mxu0 %v519
  %726 = vmatprep.subr.bf16.mxu0 0
  %727 = vmatpush1.bf16.msra.mxu0 %v520
  %728 = vmatprep.subr.bf16.mxu0 0
  %729 = vmatpush1.bf16.msra.mxu0 %v521
  %730 = vmatprep.subr.bf16.mxu0 0
  %731 = vmatpush1.bf16.msra.mxu0 %v522
  %732 = vmatprep.subr.bf16.mxu0 0
  %733 = vmatpush1.bf16.msra.mxu0 %v523
  %734 = vmatprep.subr.bf16.mxu0 0
  %735 = vmatpush1.bf16.msra.mxu0 %v524
  %736 = vmatprep.subr.bf16.mxu0 0
  %737 = vmatpush1.bf16.msra.mxu0 %v525
  %738 = vmatprep.subr.bf16.mxu0 0
  %739 = vmatpush1.bf16.msra.mxu0 %v526
  %740 = vmatprep.subr.bf16.mxu0 0
  %741 = vmatpush1.bf16.msra.mxu0 %v527
  %742 = vmatprep.subr.bf16.mxu0 0
  %743 = vmatpush1.bf16.msra.mxu0 %v528
  %744 = vmatprep.subr.bf16.mxu0 0
  %745 = vmatpush1.bf16.msra.mxu0 %v529
  %746 = vmatprep.mubr.bf16.mxu0 %v71
  %747 = vmatmul.mubr.bf16.gmra.mrb[0].mxu0 %v70
  %v748 = vpop.f32.mrb[0].mxu0
  %v749 = vadd.f32 %v709, %v748
  %v750 = vpop.f32.mrb[0].mxu0
  %v751 = vpop.f32.mrb[0].mxu0
  %v752 = vpop.f32.mrb[0].mxu0
  %753 = vdwg.mxu0
  %v754 = vmax.f32 %v749, 0.0
  %vm755 = vcmask 326656
  %v757 = vsel %vm755, %v754, 0
  %759 = vmatprep.subr.mxu0 0.0
  %760 = vmatpush1.msra.mxu0 %v73
  %761 = vmatprep.subr.mxu0 0.0
  %762 = vmatpush1.msra.mxu0 %v74
  %763 = vmatprep.subr.mxu0 0.0
  %764 = vmatpush1.msra.mxu0 %v75
  %765 = vmatprep.subr.mxu0 0.0
  %766 = vmatpush1.msra.mxu0 %v76
  %767 = vmatprep.subr.mxu0 0.0
  %768 = vmatpush1.msra.mxu0 %v77
  %769 = vmatprep.subr.mxu0 0.0
  %770 = vmatpush1.msra.mxu0 0.0
  %771 = vmatprep.subr.mxu0 0.0
  %772 = vmatpush1.msra.mxu0 0.0
  %773 = vmatprep.subr.mxu0 0.0
  %774 = vmatpush1.msra.mxu0 0.0
  %775 = vmatprep.subr.mxu0 0.0
  %776 = vmatpush1.msra.mxu0 0.0
  %777 = vmatprep.subr.mxu0 0.0
  %778 = vmatpush1.msra.mxu0 0.0
  %779 = vmatprep.subr.mxu0 0.0
  %780 = vmatpush1.msra.mxu0 0.0
  %781 = vmatprep.subr.mxu0 0.0
  %782 = vmatpush1.msra.mxu0 0.0
  %783 = vmatprep.subr.mxu0 0.0
  %784 = vmatpush1.msra.mxu0 0.0
  %785 = vmatprep.subr.mxu0 0.0
  %786 = vmatpush1.msra.mxu0 0.0
  %787 = vmatprep.subr.mxu0 0.0
  %788 = vmatpush1.msra.mxu0 0.0
  %789 = vmatprep.subr.mxu0 0.0
  %790 = vmatpush1.msra.mxu0 0.0
  %791 = vmatprep.subr.mxu0 0.0
  %792 = vmatpush1.msra.mxu0 0.0
  %793 = vmatprep.subr.mxu0 0.0
  %794 = vmatpush1.msra.mxu0 0.0
  %795 = vmatprep.subr.mxu0 0.0
  %796 = vmatpush1.msra.mxu0 0.0
  %797 = vmatprep.subr.mxu0 0.0
  %798 = vmatpush1.msra.mxu0 0.0
  %799 = vmatprep.subr.mxu0 0.0
  %800 = vmatpush1.msra.mxu0 0.0
  %801 = vmatprep.subr.mxu0 0.0
  %802 = vmatpush1.msra.mxu0 0.0
  %803 = vmatprep.subr.mxu0 0.0
  %804 = vmatpush1.msra.mxu0 0.0
  %805 = vmatprep.subr.mxu0 0.0
  %806 = vmatpush1.msra.mxu0 0.0
  %807 = vmatprep.subr.mxu0 0.0
  %808 = vmatpush1.msra.mxu0 0.0
  %809 = vmatprep.subr.mxu0 0.0
  %810 = vmatpush1.msra.mxu0 0.0
  %811 = vmatprep.subr.mxu0 0.0
  %812 = vmatpush1.msra.mxu0 0.0
  %813 = vmatprep.subr.mxu0 0.0
  %814 = vmatpush1.msra.mxu0 0.0
  %815 = vmatprep.subr.mxu0 0.0
  %816 = vmatpush1.msra.mxu0 0.0
  %817 = vmatprep.subr.mxu0 0.0
  %818 = vmatpush1.msra.mxu0 0.0
  %819 = vmatprep.subr.mxu0 0.0
  %820 = vmatpush1.msra.mxu0 0.0
  %821 = vmatprep.subr.mxu0 0.0
  %822 = vmatpush1.msra.mxu0 0.0
  %823 = vmatprep.mubr.f32.mxu0 0.0
  %824 = vmatmul.mubr.f32.gmra.mrb[0].mxu0 %v757
  %v825 = vpop.f32.mrb[0].mxu0
  %v826 = vadd.f32 0.0, %v825
  %v827 = vpop.f32.mrb[0].mxu0
  %828 = vdwg.mxu0
  %v829 = vmax.f32 %v826, 0.0
  %v830 = vpack.c.bf16 %v829, %v829
  %v831 = vld [vmem:[%s3] sm:$0xff]
  %v832 = vld [vmem:[%s3 + $0x8] sm:$0xff]
  %v833 = vld [vmem:[%s3 + $0x10] sm:$0xff]
  %v834 = vld [vmem:[%s3 + $0x18] sm:$0xff]
  %v835 = vld [vmem:[%s3 + $0x20] sm:$0xff]
  %v836 = vld [vmem:[%s3 + $0x28] sm:$0xff]
  %v837 = vld [vmem:[%s3 + $0x30] sm:$0xff]
  %v838 = vld [vmem:[%s3 + $0x38] sm:$0xff]
  %v839 = vld [vmem:[%s3 + $0x40] sm:$0xff]
  %v840 = vld [vmem:[%s3 + $0x48] sm:$0xff]
  %v841 = vld [vmem:[%s3 + $0x50] sm:$0xff]
  %v842 = vld [vmem:[%s3 + $0x58] sm:$0xff]
  %v843 = vld [vmem:[%s3 + $0x60] sm:$0xff]
  %v844 = vld [vmem:[%s3 + $0x68] sm:$0xff]
  %v845 = vld [vmem:[%s3 + $0x70] sm:$0xff]
  %v846 = vld [vmem:[%s3 + $0x78] sm:$0xff]
  %v847 = vld [vmem:[%s3 + $0x80] sm:$0xff]
  %v848 = vld [vmem:[%s3 + $0x88] sm:$0xff]
  %v849 = vld [vmem:[%s3 + $0x90] sm:$0xff]
  %v850 = vld [vmem:[%s3 + $0x98] sm:$0xff]
  %v871 = vunpack.c.l.b16 %v831
  %v872 = vunpack.c.h.b16 %v831
  %v873 = vunpack.c.l.b16 %v832
  %v874 = vunpack.c.h.b16 %v832
  %v875 = vunpack.c.l.b16 %v833
  %v876 = vunpack.c.h.b16 %v833
  %v877 = vunpack.c.l.b16 %v834
  %v878 = vunpack.c.h.b16 %v834
  %v879 = vunpack.c.l.b16 %v835
  %v880 = vunpack.c.h.b16 %v835
  %v881 = vunpack.c.l.b16 %v836
  %v882 = vunpack.c.h.b16 %v836
  %v883 = vunpack.c.l.b16 %v837
  %v884 = vunpack.c.h.b16 %v837
  %v885 = vunpack.c.l.b16 %v838
  %v886 = vunpack.c.h.b16 %v838
  %v887 = vunpack.c.l.b16 %v839
  %v888 = vunpack.c.h.b16 %v839
  %v889 = vunpack.c.l.b16 %v840
  %v890 = vunpack.c.h.b16 %v840
  %v891 = vunpack.c.l.b16 %v841
  %v892 = vunpack.c.h.b16 %v841
  %v893 = vunpack.c.l.b16 %v842
  %v894 = vunpack.c.h.b16 %v842
  %v895 = vunpack.c.l.b16 %v843
  %v896 = vunpack.c.h.b16 %v843
  %v897 = vunpack.c.l.b16 %v844
  %v898 = vunpack.c.h.b16 %v844
  %v899 = vunpack.c.l.b16 %v845
  %v900 = vunpack.c.h.b16 %v845
  %v901 = vunpack.c.l.b16 %v846
  %v902 = vunpack.c.h.b16 %v846
  %v903 = vunpack.c.l.b16 %v847
  %v904 = vunpack.c.h.b16 %v847
  %v905 = vunpack.c.l.b16 %v848
  %v906 = vunpack.c.h.b16 %v848
  %v907 = vunpack.c.l.b16 %v849
  %v908 = vunpack.c.h.b16 %v849
  %v909 = vunpack.c.l.b16 %v850
  %v910 = vunpack.c.h.b16 %v850
  %v911 = vpack.c.b16 %v879, %v871
  %v912 = vpack.c.b16 %v880, %v872
  %v913 = vpack.c.b16 %v881, %v873
  %v914 = vpack.c.b16 %v882, %v874
  %v915 = vpack.c.b16 %v883, %v875
  %v916 = vpack.c.b16 %v884, %v876
  %v917 = vpack.c.b16 %v885, %v877
  %v918 = vpack.c.b16 %v886, %v878
  %v919 = vpack.c.b16 %v895, %v887
  %v920 = vpack.c.b16 %v896, %v888
  %v921 = vpack.c.b16 %v897, %v889
  %v922 = vpack.c.b16 %v898, %v890
  %v923 = vpack.c.b16 %v899, %v891
  %v924 = vpack.c.b16 %v900, %v892
  %v925 = vpack.c.b16 %v901, %v893
  %v926 = vpack.c.b16 %v902, %v894
  %v927 = vpack.c.b16 %v903, %v903
  %v928 = vpack.c.b16 %v904, %v904
  %v929 = vpack.c.b16 %v905, %v905
  %v930 = vpack.c.b16 %v906, %v906
  %v931 = vpack.c.b16 %v907, %v907
  %v932 = vpack.c.b16 %v908, %v908
  %v933 = vpack.c.b16 %v909, %v909
  %v934 = vpack.c.b16 %v910, %v910
  %v952 = vsel %vm755, %v830, 0
  %vm954 = vcmask 1043456
  %v956 = vsel %vm954, %v927, 0
  %v959 = vsel %vm954, %v928, 0
  %v962 = vsel %vm954, %v929, 0
  %v965 = vsel %vm954, %v930, 0
  %v968 = vsel %vm954, %v931, 0
  %v971 = vsel %vm954, %v932, 0
  %v974 = vsel %vm954, %v933, 0
  %v977 = vsel %vm954, %v934, 0
  %979 = vmatprep.subr.bf16.mxu0 %v912
  %980 = vmatpush1.bf16.msra.mxu0 %v911
  %981 = vmatprep.subr.bf16.mxu0 %v920
  %982 = vmatpush1.bf16.msra.mxu0 %v919
  %983 = vmatprep.subr.bf16.mxu0 %v959
  %984 = vmatpush1.bf16.msra.mxu0 %v956
  %985 = vmatprep.subr.bf16.mxu0 0
  %986 = vmatpush1.bf16.msra.mxu0 0
  %987 = vmatprep.subr.bf16.mxu0 0
  %988 = vmatpush1.bf16.msra.mxu0 0
  %989 = vmatprep.subr.bf16.mxu0 0
  %990 = vmatpush1.bf16.msra.mxu0 0
  %991 = vmatprep.subr.bf16.mxu0 0
  %992 = vmatpush1.bf16.msra.mxu0 0
  %993 = vmatprep.subr.bf16.mxu0 0
  %994 = vmatpush1.bf16.msra.mxu0 0
  %995 = vmatprep.subr.bf16.mxu0 0
  %996 = vmatpush1.bf16.msra.mxu0 0
  %997 = vmatprep.subr.bf16.mxu0 0
  %998 = vmatpush1.bf16.msra.mxu0 0
  %999 = vmatprep.subr.bf16.mxu0 0
  %1000 = vmatpush1.bf16.msra.mxu0 0
  %1001 = vmatprep.subr.bf16.mxu0 0
  %1002 = vmatpush1.bf16.msra.mxu0 0
  %1003 = vmatprep.subr.bf16.mxu0 0
  %1004 = vmatpush1.bf16.msra.mxu0 0
  %1005 = vmatprep.subr.bf16.mxu0 0
  %1006 = vmatpush1.bf16.msra.mxu0 0
  %1007 = vmatprep.subr.bf16.mxu0 0
  %1008 = vmatpush1.bf16.msra.mxu0 0
  %1009 = vmatprep.subr.bf16.mxu0 0
  %1010 = vmatpush1.bf16.msra.mxu0 0
  %1011 = vmatprep.mubr.bf16.mxu0 0
  %1012 = vmatmul.mubr.bf16.gmra.mrb[0].mxu0 %v952
  %v1013 = vpop.f32.mrb[0].mxu0
  %v1014 = vadd.f32 0.0, %v1013
  %v1015 = vpop.f32.mrb[0].mxu0
  %v1016 = vadd.f32 0.0, %v1015
  %v1017 = vpop.f32.mrb[0].mxu0
  %v1018 = vpop.f32.mrb[0].mxu0
  %1019 = vdwg.mxu0
  %1020 = vmatprep.subr.bf16.mxu0 %v914
  %1021 = vmatpush1.bf16.msra.mxu0 %v913
  %1022 = vmatprep.subr.bf16.mxu0 %v922
  %1023 = vmatpush1.bf16.msra.mxu0 %v921
  %1024 = vmatprep.subr.bf16.mxu0 %v965
  %1025 = vmatpush1.bf16.msra.mxu0 %v962
  %1026 = vmatprep.subr.bf16.mxu0 0
  %1027 = vmatpush1.bf16.msra.mxu0 0
  %1028 = vmatprep.subr.bf16.mxu0 0
  %1029 = vmatpush1.bf16.msra.mxu0 0
  %1030 = vmatprep.subr.bf16.mxu0 0
  %1031 = vmatpush1.bf16.msra.mxu0 0
  %1032 = vmatprep.subr.bf16.mxu0 0
  %1033 = vmatpush1.bf16.msra.mxu0 0
  %1034 = vmatprep.subr.bf16.mxu0 0
  %1035 = vmatpush1.bf16.msra.mxu0 0
  %1036 = vmatprep.subr.bf16.mxu0 0
  %1037 = vmatpush1.bf16.msra.mxu0 0
  %1038 = vmatprep.subr.bf16.mxu0 0
  %1039 = vmatpush1.bf16.msra.mxu0 0
  %1040 = vmatprep.subr.bf16.mxu0 0
  %1041 = vmatpush1.bf16.msra.mxu0 0
  %1042 = vmatprep.subr.bf16.mxu0 0
  %1043 = vmatpush1.bf16.msra.mxu0 0
  %1044 = vmatprep.subr.bf16.mxu0 0
  %1045 = vmatpush1.bf16.msra.mxu0 0
  %1046 = vmatprep.subr.bf16.mxu0 0
  %1047 = vmatpush1.bf16.msra.mxu0 0
  %1048 = vmatprep.subr.bf16.mxu0 0
  %1049 = vmatpush1.bf16.msra.mxu0 0
  %1050 = vmatprep.subr.bf16.mxu0 0
  %1051 = vmatpush1.bf16.msra.mxu0 0
  %1052 = vmatprep.mubr.bf16.mxu0 0
  %1053 = vmatmul.mubr.bf16.gmra.mrb[0].mxu0 %v952
  %v1054 = vpop.f32.mrb[0].mxu0
  %v1055 = vadd.f32 0.0, %v1054
  %v1056 = vpop.f32.mrb[0].mxu0
  %v1057 = vadd.f32 0.0, %v1056
  %v1058 = vpop.f32.mrb[0].mxu0
  %v1059 = vpop.f32.mrb[0].mxu0
  %1060 = vdwg.mxu0
  %1061 = vmatprep.subr.bf16.mxu0 %v916
  %1062 = vmatpush1.bf16.msra.mxu0 %v915
  %1063 = vmatprep.subr.bf16.mxu0 %v924
  %1064 = vmatpush1.bf16.msra.mxu0 %v923
  %1065 = vmatprep.subr.bf16.mxu0 %v971
  %1066 = vmatpush1.bf16.msra.mxu0 %v968
  %1067 = vmatprep.subr.bf16.mxu0 0
  %1068 = vmatpush1.bf16.msra.mxu0 0
  %1069 = vmatprep.subr.bf16.mxu0 0
  %1070 = vmatpush1.bf16.msra.mxu0 0
  %1071 = vmatprep.subr.bf16.mxu0 0
  %1072 = vmatpush1.bf16.msra.mxu0 0
  %1073 = vmatprep.subr.bf16.mxu0 0
  %1074 = vmatpush1.bf16.msra.mxu0 0
  %1075 = vmatprep.subr.bf16.mxu0 0
  %1076 = vmatpush1.bf16.msra.mxu0 0
  %1077 = vmatprep.subr.bf16.mxu0 0
  %1078 = vmatpush1.bf16.msra.mxu0 0
  %1079 = vmatprep.subr.bf16.mxu0 0
  %1080 = vmatpush1.bf16.msra.mxu0 0
  %1081 = vmatprep.subr.bf16.mxu0 0
  %1082 = vmatpush1.bf16.msra.mxu0 0
  %1083 = vmatprep.subr.bf16.mxu0 0
  %1084 = vmatpush1.bf16.msra.mxu0 0
  %1085 = vmatprep.subr.bf16.mxu0 0
  %1086 = vmatpush1.bf16.msra.mxu0 0
  %1087 = vmatprep.subr.bf16.mxu0 0
  %1088 = vmatpush1.bf16.msra.mxu0 0
  %1089 = vmatprep.subr.bf16.mxu0 0
  %1090 = vmatpush1.bf16.msra.mxu0 0
  %1091 = vmatprep.subr.bf16.mxu0 0
  %1092 = vmatpush1.bf16.msra.mxu0 0
  %1093 = vmatprep.mubr.bf16.mxu0 0
  %1094 = vmatmul.mubr.bf16.gmra.mrb[0].mxu0 %v952
  %v1095 = vpop.f32.mrb[0].mxu0
  %v1096 = vadd.f32 0.0, %v1095
  %v1097 = vpop.f32.mrb[0].mxu0
  %v1098 = vadd.f32 0.0, %v1097
  %v1099 = vpop.f32.mrb[0].mxu0
  %v1100 = vpop.f32.mrb[0].mxu0
  %1101 = vdwg.mxu0
  %1102 = vmatprep.subr.bf16.mxu0 %v918
  %1103 = vmatpush1.bf16.msra.mxu0 %v917
  %1104 = vmatprep.subr.bf16.mxu0 %v926
  %1105 = vmatpush1.bf16.msra.mxu0 %v925
  %1106 = vmatprep.subr.bf16.mxu0 %v977
  %1107 = vmatpush1.bf16.msra.mxu0 %v974
  %1108 = vmatprep.subr.bf16.mxu0 0
  %1109 = vmatpush1.bf16.msra.mxu0 0
  %1110 = vmatprep.subr.bf16.mxu0 0
  %1111 = vmatpush1.bf16.msra.mxu0 0
  %1112 = vmatprep.subr.bf16.mxu0 0
  %1113 = vmatpush1.bf16.msra.mxu0 0
  %1114 = vmatprep.subr.bf16.mxu0 0
  %1115 = vmatpush1.bf16.msra.mxu0 0
  %1116 = vmatprep.subr.bf16.mxu0 0
  %1117 = vmatpush1.bf16.msra.mxu0 0
  %1118 = vmatprep.subr.bf16.mxu0 0
  %1119 = vmatpush1.bf16.msra.mxu0 0
  %1120 = vmatprep.subr.bf16.mxu0 0
  %1121 = vmatpush1.bf16.msra.mxu0 0
  %1122 = vmatprep.subr.bf16.mxu0 0
  %1123 = vmatpush1.bf16.msra.mxu0 0
  %1124 = vmatprep.subr.bf16.mxu0 0
  %1125 = vmatpush1.bf16.msra.mxu0 0
  %1126 = vmatprep.subr.bf16.mxu0 0
  %1127 = vmatpush1.bf16.msra.mxu0 0
  %1128 = vmatprep.subr.bf16.mxu0 0
  %1129 = vmatpush1.bf16.msra.mxu0 0
  %1130 = vmatprep.subr.bf16.mxu0 0
  %1131 = vmatpush1.bf16.msra.mxu0 0
  %1132 = vmatprep.subr.bf16.mxu0 0
  %1133 = vmatpush1.bf16.msra.mxu0 0
  %1134 = vmatprep.mubr.bf16.mxu0 0
  %1135 = vmatmul.mubr.bf16.gmra.mrb[0].mxu0 %v952
  %v1136 = vpop.f32.mrb[0].mxu0
  %v1137 = vadd.f32 0.0, %v1136
  %v1138 = vpop.f32.mrb[0].mxu0
  %v1139 = vadd.f32 0.0, %v1138
  %v1140 = vpop.f32.mrb[0].mxu0
  %v1141 = vpop.f32.mrb[0].mxu0
  %1142 = vdwg.mxu0
  %v1151 = vcombine.low %v1014, %v1016
  %v1152 = vcombine.low %v1055, %v1057
  %v1154 = vunpack.c.l.s4 1983009808
  %v1155 = vunpack.c.0.s8 %v1154
  %v1156 = vlaneseq
  %v1157 = vshrl.u32 %v1156, 7
  %v1158 = vsub.s32 %v1155, %v1157
  %v1159 = vrot.slane %v1151, %v1158
  %v1161 = vunpack.c.l.s4 1983009808
  %v1162 = vunpack.c.0.s8 %v1161
  %v1163 = vlaneseq
  %v1164 = vshrl.u32 %v1163, 7
  %v1165 = vsub.s32 %v1162, %v1164
  %v1166 = vrot.slane %v1152, %v1165
  %v1167 = vcombine.low %v1159, %v1166
  %v1168 = vcombine.low %v1096, %v1098
  %v1169 = vcombine.low %v1137, %v1139
  %v1171 = vunpack.c.l.s4 1983009808
  %v1172 = vunpack.c.0.s8 %v1171
  %v1173 = vlaneseq
  %v1174 = vshrl.u32 %v1173, 7
  %v1175 = vsub.s32 %v1172, %v1174
  %v1176 = vrot.slane %v1168, %v1175
  %v1178 = vunpack.c.l.s4 1983009808
  %v1179 = vunpack.c.0.s8 %v1178
  %v1180 = vlaneseq
  %v1181 = vshrl.u32 %v1180, 7
  %v1182 = vsub.s32 %v1179, %v1181
  %v1183 = vrot.slane %v1169, %v1182
  %v1184 = vcombine.low %v1176, %v1183
  %1187 = vst [vmem:[%s4] sm:$0xff] %v1167
  %1188 = vst [vmem:[%s4 + $0x8] sm:$0xff] %v1184
  // Predicated region
  $region18: #{ae_forward.1} parent=0 // pred_check
    _
  $region19: #{ae_forward.1} parent=0 // pred_check_branch
    %1190 = sbr.rel (0) target = $region21
  $region20: #{ae_forward.1} parent=0 // pred_region
    _
  $region21: #{ae_forward.1} parent=0 // pred_fallthru
    _
  // Predicated region
  $region22: #{ae_forward.1} parent=0 // pred_check
    _
  $region23: #{ae_forward.1} parent=0 // pred_check_branch
    %1192 = sbr.rel (0) target = $region25
  $region24: #{ae_forward.1} parent=0 // pred_region
    _
  $region25: #{ae_forward.1} parent=0 // pred_fallthru
    _

</llo_original>
